<compile_context>
chip_gen: v6e
topology: v6e:2x2x1
jax: 0.10.0
libtpu: 0.0.40
codegen_flags: <defaults>
</compile_context>

<pallas_src>
import jax
import jax.numpy as jnp
from jax.experimental import pallas as pl
from jax.experimental.pallas import tpu as pltpu


_LANE = 128


def _round_up(a, b):
    return -(-a // b) * b


def _vmem_capacity_bytes():
    try:
        return int(pltpu.get_tpu_info().vmem_capacity_bytes)
    except Exception:
        return 64 * 1024 * 1024  # conservative fallback (v7x per-core VMEM)


def pose_geo_kernel(sq_ref, x_ref, o_ref):
    # sq_ref : (1, 1, TL)  f32 squared distances, lane-dense fused G*K axis
    # x_ref  : (1, TC, TL) knn_x tile
    # o_ref  : (1, TC, TL) output tile
    # sigma = 1.0  ->  exp(-dist / (2 * sigma**2)) == exp(-0.5 * sqrt(sq))
    w = jnp.exp(-0.5 * jnp.sqrt(sq_ref[...]))                 # EUP slot; f32
    o_ref[...] = (x_ref[...].astype(jnp.float32) * w).astype(o_ref.dtype)


def _choose_tiles(B, C, GK, itemsize, vmem_cap):
    """Pick (TC, TL): C-rows per tile and fused-lane width per tile."""
    # Per-buffer budget for a knn_x / out tile, scaled to the chip's VMEM.
    budget = max(2 << 20, min(8 << 20, vmem_cap // 20))
    sub = 8 * max(1, 4 // itemsize)            # sublane padding quantum (f32:8, bf16:16)

    # C tiling: keep TC == C unless even a 128-lane tile would bust the budget.
    TC = C
    if _round_up(TC, sub) * _LANE * itemsize > budget:
        TC = max(sub, (budget // (_LANE * itemsize)) // sub * sub)
    tc_pad = _round_up(TC, sub)

    # Largest 128-multiple lane width fitting the budget (cap at padded GK).
    max_tl = max(_LANE, (budget // (tc_pad * itemsize)) // _LANE * _LANE)
    max_tl = min(max_tl, _round_up(GK, _LANE))

    # Prefer exact 128-multiple divisors of GK (no masked tail); otherwise any
    # 128-multiple with a cdiv grid (single masked tail block per (b, c)).
    exact = [d for d in range(_LANE, max_tl + 1, _LANE) if GK % d == 0]
    cands = sorted(exact or list(range(_LANE, max_tl + 1, _LANE)), reverse=True)

    nc = -(-C // TC)

    def steps(tl):
        return B * nc * (-(-GK // tl))

    # v7x has 2 TensorCores: make sure both get work (prefer >=8, then >=2).
    for want in (8, 2, 1):
        ok = [tl for tl in cands if steps(tl) >= want]
        if ok:
            return TC, ok[0]
    return TC, cands[0]


def pose_geo(knn_xyz, knn_x, lc_xyz):
    """knn_xyz: (B,3,G,K), knn_x: (B,C,G,K), lc_xyz: (B,G,3) -> (B,C,G,K)."""
    B, C, G, K = knn_x.shape
    assert knn_xyz.shape == (B, 3, G, K)
    assert lc_xyz.shape == (B, G, 3)
    assert K == 40, "PyTorch forward hardcodes K=40 via expand(-1,-1,-1,40)"
    GK = G * K
    itemsize_x = jnp.dtype(knn_x.dtype).itemsize

    # --- tiny fused XLA prepass: squared distance, lane-dense (B, 1, G*K) ---
    # Reads xyz once (~3/(2C) of the kernel traffic) and writes one f32 row;
    # this replaces the previous HBM materialization of the K-expanded lc.
    lc = jnp.transpose(lc_xyz, (0, 2, 1)).astype(jnp.float32)[..., None]   # (B,3,G,1)
    diff = knn_xyz.astype(jnp.float32) - lc                                 # (B,3,G,K)
    sq = jnp.sum(diff * diff, axis=1).reshape(B, 1, GK)                     # (B,1,GK) f32

    x2 = knn_x.reshape(B, C, GK)                                            # free reshape

    vmem_cap = _vmem_capacity_bytes()
    TC, TL = _choose_tiles(B, C, GK, itemsize_x, vmem_cap)
    NC = -(-C // TC)
    NL = -(-GK // TL)

    # VMEM accounting incl. sublane padding; Pallas double-buffers each buffer.
    sub = 8 * max(1, 4 // itemsize_x)
    tile_x_bytes = _round_up(TC, sub) * TL * itemsize_x
    tile_sq_bytes = 8 * TL * 4
    block_bytes = 2 * tile_x_bytes + tile_sq_bytes
    vmem_limit = max(32 << 20, 2 * block_bytes + (8 << 20))
    vmem_limit = min(vmem_limit, max(32 << 20, vmem_cap - (12 << 20)))

    cost = pl.CostEstimate(
        flops=B * C * GK + 4 * B * GK,
        transcendentals=2 * B * GK,
        bytes_accessed=(2 * C * itemsize_x + 4) * B * GK,
    )

    out2 = pl.pallas_call(
        pose_geo_kernel,
        out_shape=jax.ShapeDtypeStruct((B, C, GK), knn_x.dtype),
        grid=(B, NC, NL),
        in_specs=[
            pl.BlockSpec((1, 1, TL), lambda b, c, l: (b, 0, l)),   # sq (shared over C)
            pl.BlockSpec((1, TC, TL), lambda b, c, l: (b, c, l)),  # knn_x
        ],
        out_specs=pl.BlockSpec((1, TC, TL), lambda b, c, l: (b, c, l)),
        compiler_params=pltpu.CompilerParams(
            dimension_semantics=("parallel", "parallel", "parallel"),
            vmem_limit_bytes=int(vmem_limit),
        ),
        cost_estimate=cost,
    )(sq, x2)

    return out2.reshape(B, C, G, K)


def pose_geo_ref(knn_xyz, knn_x, lc_xyz):
    """Pure-JAX reference mirroring the PyTorch forward."""
    lc = jnp.transpose(lc_xyz, (0, 2, 1))[..., None]           # (B,3,G,1)
    dist = jnp.linalg.norm(knn_xyz - lc, axis=1)                # (B,G,K)
    w = jnp.exp(-dist / 2.0)
    return knn_x * w[:, None, :, :]


if __name__ == "__main__":
    B, C, G, K = 2, 4, 16, 40
    key = jax.random.PRNGKey(0)
    k1, k2, k3 = jax.random.split(key, 3)
    knn_xyz = jax.random.normal(k1, (B, 3, G, K), dtype=jnp.float32)
    knn_x = jax.random.normal(k2, (B, C, G, K), dtype=jnp.float32)
    lc_xyz = jax.random.normal(k3, (B, G, 3), dtype=jnp.float32)

    out = pose_geo(knn_xyz, knn_x, lc_xyz)
    jax.block_until_ready(out)

    ref = pose_geo_ref(knn_xyz, knn_x, lc_xyz)
    assert out.shape == (B, C, G, K)
    assert jnp.allclose(out, ref, atol=1e-5, rtol=1e-5)

    print("KERNEL_OK")
</pallas_src>

<mosaic_0001>
module attributes {stable_mosaic.version = 11 : i64} {
  func.func @pose_geo_kernel(%arg0: i32, %arg1: i32, %arg2: i32, %arg3: memref<1x1x128xf32, #tpu.memory_space<vmem>>, %arg4: memref<1x4x128xf32, #tpu.memory_space<vmem>>, %arg5: memref<1x4x128xf32, #tpu.memory_space<vmem>>) attributes {dimension_semantics = [#tpu.dimension_semantics<parallel>, #tpu.dimension_semantics<parallel>, #tpu.dimension_semantics<parallel>], iteration_bounds = array<i64: 2, 1, 5>, scalar_prefetch = 0 : i64, scratch_operands = 0 : i64, tpu.core_type = #tpu.core_type<tc>, window_params = [{transform_indices = @transform_0, window_bounds = array<i64: 1, 1, 128>}, {transform_indices = @transform_1, window_bounds = array<i64: 1, 4, 128>}, {transform_indices = @transform_2, window_bounds = array<i64: 1, 4, 128>}]} {
    %c0 = arith.constant 0 : index
    %c0_0 = arith.constant 0 : index
    %c0_1 = arith.constant 0 : index
    %0 = vector.load %arg3[%c0, %c0_0, %c0_1] : memref<1x1x128xf32, #tpu.memory_space<vmem>>, vector<1x1x128xf32>
    %1 = math.sqrt %0 : vector<1x1x128xf32>
    %cst = arith.constant -5.000000e-01 : f32
    %2 = vector.broadcast %cst : f32 to vector<1x1x128xf32>
    %3 = arith.mulf %2, %1 : vector<1x1x128xf32>
    %4 = math.exp %3 : vector<1x1x128xf32>
    %c0_2 = arith.constant 0 : index
    %c0_3 = arith.constant 0 : index
    %c0_4 = arith.constant 0 : index
    %5 = vector.load %arg4[%c0_2, %c0_3, %c0_4] : memref<1x4x128xf32, #tpu.memory_space<vmem>>, vector<1x4x128xf32>
    %6 = vector.broadcast %4 : vector<1x1x128xf32> to vector<1x4x128xf32>
    %7 = arith.mulf %5, %6 : vector<1x4x128xf32>
    %c0_5 = arith.constant 0 : index
    %c0_6 = arith.constant 0 : index
    %c0_7 = arith.constant 0 : index
    %8 = vector.load %arg5[%c0_5, %c0_6, %c0_7] : memref<1x4x128xf32, #tpu.memory_space<vmem>>, vector<1x4x128xf32>
    tpu.vector_store %arg5[%c0_5, %c0_6, %c0_7], %7 {strides = array<i32>} : memref<1x4x128xf32, #tpu.memory_space<vmem>>, vector<1x4x128xf32>,
    return
  }
  func.func @transform_0(%arg0: i32, %arg1: i32, %arg2: i32) -> (i32, i32, i32) {
    %c0_i32 = arith.constant 0 : i32
    %c0_i32_0 = arith.constant 0 : i32
    return %arg0, %c0_i32, %arg2 : i32, i32, i32
  }
  func.func @transform_1(%arg0: i32, %arg1: i32, %arg2: i32) -> (i32, i32, i32) {
    %c0_i32 = arith.constant 0 : i32
    return %arg0, %arg1, %arg2 : i32, i32, i32
  }
  func.func @transform_2(%arg0: i32, %arg1: i32, %arg2: i32) -> (i32, i32, i32) {
    %c0_i32 = arith.constant 0 : i32
    return %arg0, %arg1, %arg2 : i32, i32, i32
  }
}

</mosaic_0001>

<llo_original>
// kernel: tpu_custom_call.1
$region0: #{tpu_custom_call.1}
  #allocation0 [shape = 'u32[]', space=smem, size = 0x4, offset = 0x4, fixed_abs, tag = 'smem constant byte address 0x4 - core index']
  #allocation1 [shape = 'u32[144,128]{1,0:T(1,128)}', space=vmem, size = 0x12000, scoped, tag = 'internal scratch']
  %s0 = inlined_call_operand.hbm [shape: f32[2,1,640], index: 0, kind: input, shape index: {}]
  %s1 = inlined_call_operand.hbm [shape: f32[2,4,640], index: 1, kind: input, shape index: {}]
  %s2 = inlined_call_operand.hbm [shape: f32[2,4,640], index: 2, kind: output, shape index: {}]
  %s3 = sld [smem:[#allocation0]]
  $region49: #{tpu_custom_call.1} parent=0
    _
  %s5 = ssub.s32 1, %s3
  %s6 = scalar_select 0, %s5, %s3
  $region1: #{tpu_custom_call.1} parent=0
    #allocation2 [shape = 'u8[1024]{0}', space=vmem, size = 0x400, scoped, tag = 'input window, operand 0']
    #allocation3 [shape = 's32[2]{0}', space=sflag, size = 0x8, scoped, tag = 'scoped memory for tpu_custom_call.1']
    #allocation4 [shape = 's32[2]{0}', space=sflag, size = 0x8, scoped, tag = 'scoped memory for tpu_custom_call.1']
    #allocation5 [shape = 'u8[4096]{0}', space=vmem, size = 0x1000, scoped, tag = 'input window, operand 1']
    #allocation6 [shape = 's32[2]{0}', space=sflag, size = 0x8, scoped, tag = 'scoped memory for tpu_custom_call.1']
    #allocation7 [shape = 'u8[4096]{0}', space=vmem, size = 0x1000, scoped, tag = 'output window, operand 0']
    %7 = vsyncpa [#allocation3], 0
    %s8 = scalar_lea.sflag [#allocation3], 1
    %9 = vsyncpa %s8, 0
    %10 = vsyncpa [#allocation6], 0
    %s11 = scalar_lea.sflag [#allocation6], 1
    %12 = vsyncpa %s11, 0
    %13 = vsyncpa [#allocation4], 0
    %s14 = scalar_lea.sflag [#allocation4], 1
    %15 = vsyncpa %s14, 0
    loop: start=0, step=1, limit=12
    $region2: #{tpu_custom_call.1} parent=1 // loop_pre_header
      _
    $region3: #{tpu_custom_call.1} parent=1 // loop_header
      %s17 = sphi 0, %s21
      %p18 = scmp.ge.s32.totalorder %s17, 12
      %s24 = sphi 0, %s43
      %s25 = sphi 0, %s39
      %s26 = sphi 0, %s35
      %s27 = sphi 0, %s24
      %s28 = sphi 0, %s25
      %s29 = sphi 0, %s26
      %s30 = sphi 0, %s27
      %s31 = sphi 0, %s28
      %s32 = sphi 0, %s29
      %s48 = sphi 0, %s50
      %s51 = sphi 0, %s48
      %s52 = sphi 0, %s51
      %s68 = sphi 0, %s52
      %s78 = sphi 0, %s80
      %s81 = sphi 0, %s78
      %s82 = sphi 0, %s81
      %s98 = sphi 0, %s82
      %s108 = sphi 0, %s110
      %s111 = sphi 0, %s108
      %s112 = sphi 0, %s111
      %s128 = sphi 0, %s112
    $region4: #{tpu_custom_call.1} parent=1 // loop_header_branch
      %20 = sbr.rel (%p18) target = $region8
    $region5: #{tpu_custom_call.1} parent=1 // loop_body
      %s22 = ssub.s32 %s17, 1
      %s23 = ssub.s32 %s17, 2
      %s33 = sadd.s32 1, %s26
      %p34 = scmp.ge.s32.totalorder %s33, 5
      %s35 = scalar_select %p34, 0, %s33
      %s36 = sadd.s32 1, %s25
      %s37 = scalar_select %p34, %s36, %s25
      %p38 = scmp.ge.s32.totalorder %s37, 1
      %s39 = scalar_select %p38, 0, %s37
      %s40 = sadd.s32 1, %s24
      %s41 = scalar_select %p38, %s40, %s24
      %p42 = scmp.ge.s32.totalorder %s41, 2
      %s43 = scalar_select %p42, 0, %s41
      %s44 = ssub.s32 %s24, %s43
      %s45 = ssub.s32 %s26, %s35
      %s46 = sor.u32 %s44, %s45
      %p47 = scmp.eq.s32.totalorder %s46, 0
      %s49 = sadd.s32 %s48, 1
      %s50 = scalar_select %p47, %s48, %s49
      %p53 = pneg %p47
      %p54 = scmp.eq.s32.totalorder %s17, 9
      %p55 = por %p53, %p54
      %p56 = scmp.ne.s32.totalorder %s48, %s51
      %p57 = scmp.eq.s32.totalorder %s17, 0
      %p58 = por %p56, %p57
      %p59 = scmp.ne.s32.totalorder %s48, %s51
      %p60 = scmp.eq.s32.totalorder %s22, 9
      %p61 = por %p59, %p60
      %p62 = scmp.ne.s32.totalorder %s51, %s52
      %p63 = scmp.eq.s32.totalorder %s22, 0
      %p64 = por %p62, %p63
      %p65 = scmp.ne.s32.totalorder %s51, %s52
      %p66 = scmp.eq.s32.totalorder %s23, 9
      %p67 = por %p65, %p66
      %p69 = scmp.ne.s32.totalorder %s52, %s68
      %p70 = scmp.eq.s32.totalorder %s23, 0
      %p71 = por %p69, %p70
      %s72 = ssub.s32 %s24, %s43
      %s73 = ssub.s32 %s25, %s39
      %s74 = sor.u32 %s72, %s73
      %s75 = ssub.s32 %s26, %s35
      %s76 = sor.u32 %s74, %s75
      %p77 = scmp.eq.s32.totalorder %s76, 0
      %s79 = sadd.s32 %s78, 1
      %s80 = scalar_select %p77, %s78, %s79
      %p83 = pneg %p77
      %p84 = scmp.eq.s32.totalorder %s17, 9
      %p85 = por %p83, %p84
      %p86 = scmp.ne.s32.totalorder %s78, %s81
      %p87 = scmp.eq.s32.totalorder %s17, 0
      %p88 = por %p86, %p87
      %p89 = scmp.ne.s32.totalorder %s78, %s81
      %p90 = scmp.eq.s32.totalorder %s22, 9
      %p91 = por %p89, %p90
      %p92 = scmp.ne.s32.totalorder %s81, %s82
      %p93 = scmp.eq.s32.totalorder %s22, 0
      %p94 = por %p92, %p93
      %p95 = scmp.ne.s32.totalorder %s81, %s82
      %p96 = scmp.eq.s32.totalorder %s23, 9
      %p97 = por %p95, %p96
      %p99 = scmp.ne.s32.totalorder %s82, %s98
      %p100 = scmp.eq.s32.totalorder %s23, 0
      %p101 = por %p99, %p100
      %s102 = ssub.s32 %s24, %s43
      %s103 = ssub.s32 %s25, %s39
      %s104 = sor.u32 %s102, %s103
      %s105 = ssub.s32 %s26, %s35
      %s106 = sor.u32 %s104, %s105
      %p107 = scmp.eq.s32.totalorder %s106, 0
      %s109 = sadd.s32 %s108, 1
      %s110 = scalar_select %p107, %s108, %s109
      %p113 = pneg %p107
      %p114 = scmp.eq.s32.totalorder %s17, 9
      %p115 = por %p113, %p114
      %p116 = scmp.ne.s32.totalorder %s108, %s111
      %p117 = scmp.eq.s32.totalorder %s17, 0
      %p118 = por %p116, %p117
      %p119 = scmp.ne.s32.totalorder %s108, %s111
      %p120 = scmp.eq.s32.totalorder %s22, 9
      %p121 = por %p119, %p120
      %p122 = scmp.ne.s32.totalorder %s111, %s112
      %p123 = scmp.eq.s32.totalorder %s22, 0
      %p124 = por %p122, %p123
      %p125 = scmp.ne.s32.totalorder %s111, %s112
      %p126 = scmp.eq.s32.totalorder %s23, 9
      %p127 = por %p125, %p126
      %p129 = scmp.ne.s32.totalorder %s112, %s128
      %p130 = scmp.eq.s32.totalorder %s23, 0
      %p131 = por %p129, %p130
      %p132 = scmp.le.s32.totalorder 1, %s17
      %p133 = scmp.lt.s32.totalorder %s17, 11
      %p134 = pnand %p132, %p133
      %p135 = pneg %p134
      // Predicated region
      $region9: #{tpu_custom_call.1} parent=5 // pred_check
        _
      $region10: #{tpu_custom_call.1} parent=5 // pred_check_branch
        %137 = sbr.rel (%p134) target = $region12
      $region11: #{tpu_custom_call.1} parent=5 // pred_region
        %s138 = ssub.s32 %s17, 1
      $region12: #{tpu_custom_call.1} parent=5 // pred_fallthru
        _
      %p139 = scmp.lt.s32.totalorder %s17, 10
      // Predicated region
      $region13: #{tpu_custom_call.1} parent=5 // pred_check
        %p140 = pneg %p139
      $region14: #{tpu_custom_call.1} parent=5 // pred_check_branch
        %142 = sbr.rel (%p140) target = $region16
      $region15: #{tpu_custom_call.1} parent=5 // pred_region
        // Predicated region
        $region17: #{tpu_custom_call.1} parent=15 // pred_check
          %p143 = pneg %p58
        $region18: #{tpu_custom_call.1} parent=15 // pred_check_branch
          %145 = sbr.rel (%p143) target = $region20
        $region19: #{tpu_custom_call.1} parent=15 // pred_region
          %s146 = sand.u32 %s48, 1
          %s147 = scalar_lea.sflag [#allocation3], %s146
          %s148 = sand.u32 %s48, 1
          %s149 = scalar_lea.vmem [#allocation2], %s148
          %s151 = ssub.s32 16, 16
          %152 = vsyncadd %s147, %s151
          %s153 = smul.addr %s24, 5
          %s154 = sadd.s32 %s26, %s153
          %s155 = smul.addr %s154, 16
          %s156 = scalar_lea.hbm %s0, %s155
          %s158 = sshll.u32 %s149, 4
          %s159 = int_to_ptr.vmem [resolvable:$true] %s158
          %161 = dma.hbm_to_vmem [thread:$0]  %s156, 16, %s159, %s147
        $region20: #{tpu_custom_call.1} parent=15 // pred_fallthru
          _
        // Predicated region
        $region21: #{tpu_custom_call.1} parent=15 // pred_check
          %p162 = pneg %p88
        $region22: #{tpu_custom_call.1} parent=15 // pred_check_branch
          %164 = sbr.rel (%p162) target = $region24
        $region23: #{tpu_custom_call.1} parent=15 // pred_region
          %s165 = sand.u32 %s78, 1
          %s166 = scalar_lea.sflag [#allocation6], %s165
          %s167 = sand.u32 %s78, 1
          %s168 = smul.addr %s167, 4
          %s169 = scalar_lea.vmem [#allocation5], %s168
          %s171 = ssub.s32 64, 64
          %172 = vsyncadd %s166, %s171
          %s173 = smul.addr %s25, 5
          %s174 = sadd.s32 %s26, %s173
          %s175 = smul.addr %s24, 5
          %s176 = sadd.s32 %s174, %s175
          %s177 = smul.addr %s176, 64
          %s178 = scalar_lea.hbm %s1, %s177
          %s180 = sshll.u32 %s169, 4
          %s181 = int_to_ptr.vmem [resolvable:$true] %s180
          %183 = dma.hbm_to_vmem [thread:$0]  %s178, 64, %s181, %s166
        $region24: #{tpu_custom_call.1} parent=15 // pred_fallthru
          _
      $region16: #{tpu_custom_call.1} parent=5 // pred_fallthru
        _
      %p184 = scmp.le.s32.totalorder 1, %s17
      %p185 = scmp.lt.s32.totalorder %s17, 11
      %p186 = pnand %p184, %p185
      %p187 = pneg %p186
      // Predicated region
      $region25: #{tpu_custom_call.1} parent=5 // pred_check
        _
      $region26: #{tpu_custom_call.1} parent=5 // pred_check_branch
        %189 = sbr.rel (%p186) target = $region28
      $region27: #{tpu_custom_call.1} parent=5 // pred_region
        %s190 = ssub.s32 %s17, 1
        %s191 = sand.u32 %s51, 1
        %s192 = scalar_lea.sflag [#allocation3], %s191
        %s193 = sand.u32 %s51, 1
        %s194 = scalar_lea.vmem [#allocation2], %s193
        // Predicated region
        $region29: #{tpu_custom_call.1} parent=27 // pred_check
          %p195 = pneg %p64
        $region30: #{tpu_custom_call.1} parent=27 // pred_check_branch
          %197 = sbr.rel (%p195) target = $region32
        $region31: #{tpu_custom_call.1} parent=27 // pred_region
          %198 = dma.done %s192, 16
        $region32: #{tpu_custom_call.1} parent=27 // pred_fallthru
          _
        %s199 = sand.u32 %s81, 1
        %s200 = scalar_lea.sflag [#allocation6], %s199
        %s201 = sand.u32 %s81, 1
        %s202 = smul.addr %s201, 4
        %s203 = scalar_lea.vmem [#allocation5], %s202
        // Predicated region
        $region33: #{tpu_custom_call.1} parent=27 // pred_check
          %p204 = pneg %p94
        $region34: #{tpu_custom_call.1} parent=27 // pred_check_branch
          %206 = sbr.rel (%p204) target = $region36
        $region35: #{tpu_custom_call.1} parent=27 // pred_region
          %207 = dma.done %s200, 64
        $region36: #{tpu_custom_call.1} parent=27 // pred_fallthru
          _
        %s208 = sand.u32 %s51, 1
        %s209 = scalar_lea.sflag [#allocation3], %s208
        %s210 = sand.u32 %s51, 1
        %s211 = scalar_lea.vmem [#allocation2], %s210
        %p212 = pneg %p64
        %p213 = pneg %p61
        %s214 = sand.u32 %s81, 1
        %s215 = scalar_lea.sflag [#allocation6], %s214
        %s216 = sand.u32 %s81, 1
        %s217 = smul.addr %s216, 4
        %s218 = scalar_lea.vmem [#allocation5], %s217
        %p219 = pneg %p94
        %p220 = pneg %p91
        %p221 = pneg %p124
        %p222 = pneg %p121
        %s223 = sand.u32 %s111, 1
        %s224 = scalar_lea.sflag [#allocation4], %s223
        %s225 = sand.u32 %s111, 1
        %s226 = smul.addr %s225, 4
        %s227 = scalar_lea.vmem [#allocation7], %s226
        %v228 = vld [vmem:[%s194] sm:$0x1]
        %v229 = vrsqrt.pop %v228
        %v230 = vmul.f32 %v228, %v229
        %vm231 = vcmp.eq.f32.partialorder %v228, inf
        %v232 = vsel %vm231, %v228, %v230
        %vm233 = vcmp.eq.f32.partialorder %v228, 0.0
        %v234 = vand.u32 %v228, 2147483648
        %v235 = vsel %vm233, %v234, %v232
        %v236 = vmul.f32 %v235, -0.5
        %v237 = vmul.f32 %v236, 1.442695
        %v238 = vpow.pop %v237
        %v239 = vld [vmem:[%s203] sm:$0xf]
        %v241 = vlaneseq
        %v242 = vshrl.u32 %v241, 7
        %v243 = vsub.s32 0, %v242
        %v244 = vrot.slane %v238, %v243
        %v246 = vmul.f32 %v239, %v244
        %247 = vst [vmem:[%s227] sm:$0xf] %v246
        %s248 = sand.u32 %s111, 1
        %s249 = scalar_lea.sflag [#allocation4], %s248
        %s250 = sand.u32 %s111, 1
        %s251 = smul.addr %s250, 4
        %s252 = scalar_lea.vmem [#allocation7], %s251
        // Predicated region
        $region37: #{tpu_custom_call.1} parent=27 // pred_check
          %p253 = pneg %p121
        $region38: #{tpu_custom_call.1} parent=27 // pred_check_branch
          %255 = sbr.rel (%p253) target = $region40
        $region39: #{tpu_custom_call.1} parent=27 // pred_region
          %s257 = ssub.s32 64, 64
          %258 = vsyncadd %s249, %s257
          %s259 = smul.addr %s28, 5
          %s260 = sadd.s32 %s29, %s259
          %s261 = smul.addr %s27, 5
          %s262 = sadd.s32 %s260, %s261
          %s263 = smul.addr %s262, 64
          %s264 = scalar_lea.hbm %s2, %s263
          %s266 = sshll.u32 %s252, 4
          %s267 = int_to_ptr.vmem [resolvable:$true] %s266
          %269 = dma.vmem_to_hbm [thread:$0]  %s267, 64, %s264, %s249
        $region40: #{tpu_custom_call.1} parent=27 // pred_fallthru
          _
      $region28: #{tpu_custom_call.1} parent=5 // pred_fallthru
        _
      %p270 = scmp.le.s32.totalorder 2, %s17
      // Predicated region
      $region41: #{tpu_custom_call.1} parent=5 // pred_check
        %p271 = pneg %p270
      $region42: #{tpu_custom_call.1} parent=5 // pred_check_branch
        %273 = sbr.rel (%p271) target = $region44
      $region43: #{tpu_custom_call.1} parent=5 // pred_region
        %s274 = ssub.s32 %s17, 2
        // Predicated region
        $region45: #{tpu_custom_call.1} parent=43 // pred_check
          %p275 = pneg %p127
        $region46: #{tpu_custom_call.1} parent=43 // pred_check_branch
          %277 = sbr.rel (%p275) target = $region48
        $region47: #{tpu_custom_call.1} parent=43 // pred_region
          %s278 = sand.u32 %s112, 1
          %s279 = scalar_lea.sflag [#allocation4], %s278
          %s280 = sand.u32 %s112, 1
          %s281 = smul.addr %s280, 4
          %s282 = scalar_lea.vmem [#allocation7], %s281
          %283 = dma.done %s279, 64
        $region48: #{tpu_custom_call.1} parent=43 // pred_fallthru
          _
      $region44: #{tpu_custom_call.1} parent=5 // pred_fallthru
        _
    $region6: #{tpu_custom_call.1} parent=1 // loop_footer
      %s21 = sadd.s32 1, %s17
    $region7: #{tpu_custom_call.1} parent=1 // loop_footer_branch
      %16 = sbr.rel target = $region3
    $region8: #{tpu_custom_call.1} parent=1 // loop_exit
      _
    %284 = vsyncpa [#allocation3], 1
    %s285 = scalar_lea.sflag [#allocation3], 1
    %286 = vsyncpa %s285, 1
    %287 = vsyncpa [#allocation6], 1
    %s288 = scalar_lea.sflag [#allocation6], 1
    %289 = vsyncpa %s288, 1
    %290 = vsyncpa [#allocation4], 1
    %s291 = scalar_lea.sflag [#allocation4], 1
    %292 = vsyncpa %s291, 1

</llo_original>
